<compile_context>
chip_gen: v7x
topology: tpu7x:2x2x1
jax: 0.10.0
libtpu: 0.0.40
codegen_flags: <defaults>
</compile_context>

<pallas_src>
import jax
import jax.numpy as jnp
from jax.experimental import pallas as pl
from jax.experimental.pallas import tpu as pltpu


# ----------------------------- helpers -------------------------------------


def _round_up(x: int, m: int) -> int:
    return (x + m - 1) // m * m


def _pick_tn(n_padded: int) -> int:
    # Prefer 256-multiples (v6e/v7x MXUs are 256 wide); 384 only if nothing else fits.
    for cand in (512, 256, 384, 128):
        if cand <= n_padded and n_padded % cand == 0:
            return cand
    return 128


def _vmem_caps():
    """Generation-aware (budget, vmem_limit_cap, has_two_tensorcores)."""
    try:
        cap = int(pltpu.get_tpu_info().vmem_capacity_bytes)
    except Exception:  # be conservative if the query is unavailable
        cap = 64 * 1024 * 1024
    if cap >= 96 * 1024 * 1024:
        # v5e / v6e: 128 MiB VMEM, single TensorCore per chip.
        return 80 * 1024 * 1024, 100 * 1024 * 1024, False
    # v7x: 64 MiB VMEM per TensorCore, 2 TensorCores per chip.
    return 40 * 1024 * 1024, 48 * 1024 * 1024, True


def _plan(M, K, Rp, Np, xbytes, cbytes, obytes):
    """Pick (mode, tm, tn, vmem_limit_bytes)."""
    budget, limit_cap, two_tc = _vmem_caps()
    M8 = _round_up(max(M, 1), 8)

    # ---------- 1-D plan: Wa + Wb + bias fully resident ----------
    fixed_1d = K * Rp * cbytes + Rp * Np * cbytes + 8 * Np * 4
    per_row_1d = 2 * K * xbytes + 2 * Np * obytes  # x tile + out tile (double-buffered)
    if fixed_1d + 8 * per_row_1d <= budget:
        tm = max(8, min(2048, ((budget - fixed_1d) // per_row_1d) // 8 * 8))
        tm = min(tm, M8)
        if two_tc and M8 >= 16:
            # Keep >= 2 batch tiles only where a second TensorCore can use them.
            tm = min(tm, _round_up(-(-M8 // 2), 8))
        est = fixed_1d + per_row_1d * tm
        limit = int(min(max(est * 5 // 4 + (4 << 20), 32 << 20), limit_cap))
        return "1d", tm, None, limit

    # ---------- 2-D fallback: Wb / bias tiled over the output dim ----------
    tn = _pick_tn(Np)
    fixed = K * Rp * cbytes + 2 * Rp * tn * cbytes + 2 * 8 * tn * 4
    per_row = 2 * K * xbytes + 2 * tn * obytes + Rp * cbytes  # x + out + bf16 h scratch
    avail = budget - fixed
    tm = 8
    if avail > 0:
        tm = max(8, min(1024, (avail // per_row) // 8 * 8))
    tm = min(tm, M8)
    if two_tc and M8 >= 16:
        tm = min(tm, _round_up(-(-M8 // 2), 8))
    est = fixed + per_row * tm
    limit = int(min(max(est * 5 // 4 + (4 << 20), 32 << 20), limit_cap))
    return "2d", tm, tn, limit


# ----------------------------- kernels --------------------------------------


def _kernel_1d(x_ref, wa_ref, wb_ref, bias_ref, o_ref):
    # Whole forward for one batch tile: cast x in-kernel, two MXU matmuls with f32
    # accumulation, minimal epilogue (one broadcast add + one cast).
    xc = x_ref[...].astype(wa_ref.dtype)
    h = jnp.dot(xc, wa_ref[...], preferred_element_type=jnp.float32)
    y = jnp.dot(h.astype(wb_ref.dtype), wb_ref[...], preferred_element_type=jnp.float32)
    o_ref[...] = (y + bias_ref[...]).astype(o_ref.dtype)


def _kernel_2d(x_ref, wa_ref, wb_ref, bias_ref, o_ref, h_ref):
    # h = x @ Wa computed once per batch tile (first output panel only), cached in a
    # compute-dtype VMEM scratch and reused across all output panels.
    @pl.when(pl.program_id(1) == 0)
    def _():
        xc = x_ref[...].astype(wa_ref.dtype)
        h = jnp.dot(xc, wa_ref[...], preferred_element_type=jnp.float32)
        h_ref[...] = h.astype(h_ref.dtype)

    y = jnp.dot(h_ref[...], wb_ref[...], preferred_element_type=jnp.float32)
    o_ref[...] = (y + bias_ref[...]).astype(o_ref.dtype)


# ----------------------------- wrappers ------------------------------------


def prepare_compressed_linear_params(
    A_weight, B_weight, B_bias, *, compute_dtype=jnp.bfloat16
):
    """One-time layout prep (do this OUTSIDE the hot path / jit of the forward).

    A_weight : [rank, input_size]   (nn.Linear(input_size, rank).weight)
    B_weight : [output_size, rank]  (nn.Linear(rank, output_size).weight)
    B_bias   : [output_size]
    Returns (wa, wb, bias, out_features) with
      wa   : [K, Rp]  compute_dtype  (transposed; rank zero-padded to 128 lanes)
      wb   : [Rp, Np] compute_dtype  (transposed; rank & output zero-padded)
      bias : [1, Np]  float32
    K is kept at its true size (x is never padded / re-materialized in the wrapper).
    Zero padding of the rank / output dims is mathematically inert.
    """
    R, K = A_weight.shape
    N, R2 = B_weight.shape
    assert R == R2 and B_bias.shape == (N,)

    Rp = _round_up(R, 128)
    Np = _round_up(N, 128)

    wa = jnp.pad(A_weight.astype(compute_dtype).T, ((0, 0), (0, Rp - R)))
    wb = jnp.pad(B_weight.astype(compute_dtype).T, ((0, Rp - R), (0, Np - N)))
    bias = jnp.pad(B_bias.astype(jnp.float32), (0, Np - N)).reshape(1, Np)
    return wa, wb, bias, N


def compressed_linear_apply(x, wa, wb, bias, *, out_features, out_dtype=None):
    """Hot-path forward: y = (x @ Wa) @ Wb + b with pre-laid-out weights."""
    M, K = x.shape
    K2, Rp = wa.shape
    Rp2, Np = wb.shape
    assert K == K2 and Rp == Rp2 and bias.shape == (1, Np)
    N = out_features

    compute_dtype = wa.dtype
    out_dtype = jnp.dtype(out_dtype) if out_dtype is not None else x.dtype
    xbytes = jnp.dtype(x.dtype).itemsize
    cbytes = jnp.dtype(compute_dtype).itemsize
    obytes = jnp.dtype(out_dtype).itemsize

    mode, tm, tn, vmem_limit = _plan(M, K, Rp, Np, xbytes, cbytes, obytes)
    num_i = pl.cdiv(M, tm)
    flops = 2 * M * Rp * (K + Np)

    if mode == "1d":
        cost = pl.CostEstimate(
            flops=flops,
            transcendentals=0,
            bytes_accessed=(
                M * K * xbytes + K * Rp * cbytes + Rp * Np * cbytes
                + Np * 4 + M * Np * obytes
            ),
        )
        out = pl.pallas_call(
            _kernel_1d,
            out_shape=jax.ShapeDtypeStruct((M, Np), out_dtype),
            grid_spec=pltpu.PrefetchScalarGridSpec(
                num_scalar_prefetch=0,
                grid=(num_i,),
                in_specs=[
                    # x tile moves with the batch axis; read unpadded in its own dtype.
                    pl.BlockSpec((tm, K), lambda i: (i, 0)),
                    # Wa, Wb, bias: fully resident, DMA'd once (constant index maps).
                    pl.BlockSpec((K, Rp), lambda i: (0, 0),
                                 pipeline_mode=pl.Buffered(1)),
                    pl.BlockSpec((Rp, Np), lambda i: (0, 0),
                                 pipeline_mode=pl.Buffered(1)),
                    pl.BlockSpec((1, Np), lambda i: (0, 0),
                                 pipeline_mode=pl.Buffered(1)),
                ],
                out_specs=pl.BlockSpec((tm, Np), lambda i: (i, 0)),
            ),
            compiler_params=pltpu.CompilerParams(
                # TODO(synk): on v7x, confirm in xprof that the batch axis shards
                # across both TensorCores; if not, switch to pltpu.CORE_PARALLEL.
                dimension_semantics=("parallel",),
                vmem_limit_bytes=vmem_limit,
            ),
            cost_estimate=cost,
        )(x, wa, wb, bias)
    else:
        # 2-D fallback for very large output dims (Wb does not fit in VMEM).
        cost = pl.CostEstimate(
            flops=flops,
            transcendentals=0,
            bytes_accessed=(
                M * K * xbytes + K * Rp * cbytes
                + num_i * (Rp * Np * cbytes + Np * 4)   # Wb/bias re-read per batch tile
                + M * Np * obytes
            ),
        )
        out = pl.pallas_call(
            _kernel_2d,
            out_shape=jax.ShapeDtypeStruct((M, Np), out_dtype),
            grid_spec=pltpu.PrefetchScalarGridSpec(
                num_scalar_prefetch=0,
                grid=(num_i, Np // tn),
                in_specs=[
                    # x tile reused across all N steps of a batch tile.
                    pl.BlockSpec((tm, K), lambda i, j: (i, 0)),
                    # Wa fully resident, single buffer.
                    pl.BlockSpec((K, Rp), lambda i, j: (0, 0),
                                 pipeline_mode=pl.Buffered(1)),
                    # Wb / bias panels move with j (double-buffered).
                    pl.BlockSpec((Rp, tn), lambda i, j: (0, j)),
                    pl.BlockSpec((1, tn), lambda i, j: (0, j)),
                ],
                out_specs=pl.BlockSpec((tm, tn), lambda i, j: (i, j)),
                # h = x@Wa cached per batch tile in compute dtype (cast once at write).
                scratch_shapes=[pltpu.VMEM((tm, Rp), compute_dtype)],
            ),
            compiler_params=pltpu.CompilerParams(
                # N axis carries the h scratch -> must be "arbitrary".
                dimension_semantics=("parallel", "arbitrary"),
                vmem_limit_bytes=vmem_limit,
            ),
            cost_estimate=cost,
        )(x, wa, wb, bias)

    if Np != N:
        out = out[:, :N]
    return out


def compressed_linear(
    x, A_weight, B_weight, B_bias, *, compute_dtype=jnp.bfloat16, out_dtype=None
):
    """Drop-in forward matching CompressedLinear.forward (prep + apply).

    For hot loops, call prepare_compressed_linear_params() once and reuse it with
    compressed_linear_apply() so the transpose/pad/cast is not repaid every call.
    Pass out_dtype=jnp.bfloat16 when the consumer tolerates it — the output store
    is the dominant HBM term of this memory-bound kernel.
    """
    wa, wb, bias, n_out = prepare_compressed_linear_params(
        A_weight, B_weight, B_bias, compute_dtype=compute_dtype
    )
    return compressed_linear_apply(
        x, wa, wb, bias, out_features=n_out, out_dtype=out_dtype
    )


# ----------------------------- self-test -----------------------------------


if __name__ == "__main__":
    # Small shapes consistent with the module: batch=16, input=32, rank=8, output=32.
    batch, input_size, rank, output_size = 16, 32, 8, 32

    key = jax.random.PRNGKey(0)
    kx, ka, kb, kbias = jax.random.split(key, 4)

    x = jax.random.normal(kx, (batch, input_size), dtype=jnp.float32)

    # Deterministic init mimicking nn.Linear's uniform(-1/sqrt(fan_in), 1/sqrt(fan_in)).
    bound_a = 1.0 / (input_size ** 0.5)
    bound_b = 1.0 / (rank ** 0.5)
    A_weight = jax.random.uniform(ka, (rank, input_size), jnp.float32, -bound_a, bound_a)
    B_weight = jax.random.uniform(kb, (output_size, rank), jnp.float32, -bound_b, bound_b)
    B_bias = jax.random.uniform(kbias, (output_size,), jnp.float32, -bound_b, bound_b)

    # Pure-JAX reference (same semantics as the PyTorch forward).
    ref = (x @ A_weight.T) @ B_weight.T + B_bias

    # Hot-path style: lay out weights once, jit only the apply (bf16 compute, f32 out).
    wa, wb, bias, n_out = prepare_compressed_linear_params(A_weight, B_weight, B_bias)
    apply_fn = jax.jit(
        compressed_linear_apply, static_argnames=("out_features", "out_dtype")
    )
    out_bf16 = jax.block_until_ready(apply_fn(x, wa, wb, bias, out_features=n_out))
    assert out_bf16.shape == (batch, output_size)
    assert out_bf16.dtype == x.dtype
    assert jnp.allclose(out_bf16, ref, atol=5e-2, rtol=5e-2)

    # Full-precision path + batch not a multiple of 8 to exercise the ceil-div grid.
    x_odd = x[:13]
    out_f32 = jax.block_until_ready(
        compressed_linear(x_odd, A_weight, B_weight, B_bias, compute_dtype=jnp.float32)
    )
    assert out_f32.shape == (13, output_size)
    assert jnp.allclose(out_f32, ref[:13], atol=1e-5, rtol=1e-5)

    print("KERNEL_OK")
</pallas_src>

<mosaic_0001>
module attributes {stable_mosaic.version = 11 : i64} {
  func.func @_kernel_1d(%arg0: i32, %arg1: memref<8x32xf32, #tpu.memory_space<vmem>>, %arg2: memref<32x128xbf16, #tpu.memory_space<vmem>>, %arg3: memref<128x128xbf16, #tpu.memory_space<vmem>>, %arg4: memref<1x128xf32, #tpu.memory_space<vmem>>, %arg5: memref<8x128xf32, #tpu.memory_space<vmem>>) attributes {dimension_semantics = [#tpu.dimension_semantics<parallel>], iteration_bounds = array<i64: 2>, scalar_prefetch = 0 : i64, scratch_operands = 0 : i64, tpu.core_type = #tpu.core_type<tc>, window_params = [{transform_indices = @transform_0, window_bounds = array<i64: 8, 32>}, {pipeline_mode = #tpu.pipeline_mode<synchronous>, transform_indices = @transform_1, window_bounds = array<i64: 32, 128>}, {pipeline_mode = #tpu.pipeline_mode<synchronous>, transform_indices = @transform_2, window_bounds = array<i64: 128, 128>}, {pipeline_mode = #tpu.pipeline_mode<synchronous>, transform_indices = @transform_3, window_bounds = array<i64: 1, 128>}, {transform_indices = @transform_4, window_bounds = array<i64: 8, 128>}]} {
    %c0 = arith.constant 0 : index
    %c0_0 = arith.constant 0 : index
    %0 = vector.load %arg1[%c0, %c0_0] : memref<8x32xf32, #tpu.memory_space<vmem>>, vector<8x32xf32>
    %1 = arith.truncf %0 : vector<8x32xf32> to vector<8x32xbf16>
    %c0_1 = arith.constant 0 : index
    %c0_2 = arith.constant 0 : index
    %2 = vector.load %arg2[%c0_1, %c0_2] : memref<32x128xbf16, #tpu.memory_space<vmem>>, vector<32x128xbf16>
    %cst = arith.constant dense<0.000000e+00> : vector<8x128xf32>
    %3 = tpu.matmul %1, %2, %cst {dimension_numbers = #tpu.dot_dimension_numbers<[1], [0], [0], [1], [0, 0, 1, 1], [], []>} : vector<8x32xbf16>, vector<32x128xbf16>, vector<8x128xf32> -> vector<8x128xf32>
    %4 = arith.truncf %3 : vector<8x128xf32> to vector<8x128xbf16>
    %c0_3 = arith.constant 0 : index
    %c0_4 = arith.constant 0 : index
    %5 = vector.load %arg3[%c0_3, %c0_4] : memref<128x128xbf16, #tpu.memory_space<vmem>>, vector<128x128xbf16>
    %cst_5 = arith.constant dense<0.000000e+00> : vector<8x128xf32>
    %6 = tpu.matmul %4, %5, %cst_5 {dimension_numbers = #tpu.dot_dimension_numbers<[1], [0], [0], [1], [0, 0, 1, 1], [], []>} : vector<8x128xbf16>, vector<128x128xbf16>, vector<8x128xf32> -> vector<8x128xf32>
    %c0_6 = arith.constant 0 : index
    %c0_7 = arith.constant 0 : index
    %7 = vector.load %arg4[%c0_6, %c0_7] : memref<1x128xf32, #tpu.memory_space<vmem>>, vector<1x128xf32>
    %8 = vector.broadcast %7 : vector<1x128xf32> to vector<8x128xf32>
    %9 = arith.addf %6, %8 : vector<8x128xf32>
    %c0_8 = arith.constant 0 : index
    %c0_9 = arith.constant 0 : index
    %10 = vector.load %arg5[%c0_8, %c0_9] : memref<8x128xf32, #tpu.memory_space<vmem>>, vector<8x128xf32>
    tpu.vector_store %arg5[%c0_8, %c0_9], %9 {strides = array<i32>} : memref<8x128xf32, #tpu.memory_space<vmem>>, vector<8x128xf32>,
    return
  }
  func.func @transform_0(%arg0: i32) -> (i32, i32) {
    %c0_i32 = arith.constant 0 : i32
    %c0_i32_0 = arith.constant 0 : i32
    return %arg0, %c0_i32 : i32, i32
  }
  func.func @transform_1(%arg0: i32) -> (i32, i32) {
    %c0_i32 = arith.constant 0 : i32
    %c0_i32_0 = arith.constant 0 : i32
    %c0_i32_1 = arith.constant 0 : i32
    return %c0_i32, %c0_i32_0 : i32, i32
  }
  func.func @transform_2(%arg0: i32) -> (i32, i32) {
    %c0_i32 = arith.constant 0 : i32
    %c0_i32_0 = arith.constant 0 : i32
    %c0_i32_1 = arith.constant 0 : i32
    return %c0_i32, %c0_i32_0 : i32, i32
  }
  func.func @transform_3(%arg0: i32) -> (i32, i32) {
    %c0_i32 = arith.constant 0 : i32
    %c0_i32_0 = arith.constant 0 : i32
    %c0_i32_1 = arith.constant 0 : i32
    return %c0_i32, %c0_i32_0 : i32, i32
  }
  func.func @transform_4(%arg0: i32) -> (i32, i32) {
    %c0_i32 = arith.constant 0 : i32
    %c0_i32_0 = arith.constant 0 : i32
    return %arg0, %c0_i32 : i32, i32
  }
}

</mosaic_0001>

<llo_original>
// kernel: compressed_linear_apply.1
$region0: #{compressed_linear_apply.1}
  #allocation0 [shape = 'u32[]', space=smem, size = 0x4, offset = 0x4, fixed_abs, tag = 'smem constant byte address 0x4 - core index']
  #allocation1 [shape = 'u32[144,128]{1,0:T(1,128)}', space=vmem, size = 0x12000, scoped, tag = 'internal scratch']
  %s0 = inlined_call_operand.hbm [shape: f32[16,32], index: 0, kind: input, shape index: {}]
  %s1 = inlined_call_operand.hbm [shape: bf16[32,128], index: 1, kind: input, shape index: {}]
  %s2 = inlined_call_operand.hbm [shape: bf16[128,128], index: 2, kind: input, shape index: {}]
  %s3 = inlined_call_operand.vmem [shape: f32[1,128], index: 3, kind: input, shape index: {}]
  %s4 = inlined_call_operand.hbm [shape: f32[16,128], index: 4, kind: output, shape index: {}]
  %s5 = sld [smem:[#allocation0]]
  $region61: #{compressed_linear_apply.1} parent=0
    _
  %s7 = ssub.s32 1, %s5
  %s8 = scalar_select 0, %s7, %s5
  $region1: #{compressed_linear_apply.1} parent=0
    #allocation2 [shape = 'u8[8192]{0}', space=vmem, size = 0x2000, scoped, tag = 'input window, operand 0']
    #allocation3 [shape = 's32[2]{0}', space=sflag, size = 0x8, scoped, tag = 'scoped memory for compressed_linear_apply.1']
    #allocation4 [shape = 's32[2]{0}', space=sflag, size = 0x8, scoped, tag = 'scoped memory for compressed_linear_apply.1']
    #allocation5 [shape = 'u8[8192]{0}', space=vmem, size = 0x2000, scoped, tag = 'input window, operand 1, single buffered']
    #allocation6 [shape = 's32[1]{0}', space=sflag, size = 0x4, scoped, tag = 'scoped memory for compressed_linear_apply.1']
    #allocation7 [shape = 'u8[32768]{0}', space=vmem, size = 0x8000, scoped, tag = 'input window, operand 2, single buffered']
    #allocation8 [shape = 'u8[8192]{0}', space=vmem, size = 0x2000, scoped, tag = 'output window, operand 0']
    %9 = vsyncpa [#allocation3], 0
    %s10 = scalar_lea.sflag [#allocation3], 1
    %11 = vsyncpa %s10, 0
    %12 = vsyncpa [#allocation6], 0
    %13 = vsyncpa [#allocation4], 0
    %s14 = scalar_lea.sflag [#allocation4], 1
    %15 = vsyncpa %s14, 0
    loop: start=0, step=1, limit=4
    $region2: #{compressed_linear_apply.1} parent=1 // loop_pre_header
      _
    $region3: #{compressed_linear_apply.1} parent=1 // loop_header
      %s17 = sphi 0, %s21
      %p18 = scmp.ge.s32.totalorder %s17, 4
      %s27 = sphi 0, %s29
      %s30 = sphi 0, %s27
      %s31 = sphi 0, %s30
      %s47 = sphi 0, %s31
      %s51 = sphi 0, %s51
      %s53 = sphi 0, %s51
      %s54 = sphi 0, %s53
      %s68 = sphi 0, %s54
      %s72 = sphi 0, %s72
      %s74 = sphi 0, %s72
      %s75 = sphi 0, %s74
      %s89 = sphi 0, %s75
      %s93 = sphi 0, %s93
      %s95 = sphi 0, %s93
      %s96 = sphi 0, %s95
      %s110 = sphi 0, %s96
      %s116 = sphi 0, %s118
      %s119 = sphi 0, %s116
      %s120 = sphi 0, %s119
      %s136 = sphi 0, %s120
    $region4: #{compressed_linear_apply.1} parent=1 // loop_header_branch
      %20 = sbr.rel (%p18) target = $region8
    $region5: #{compressed_linear_apply.1} parent=1 // loop_body
      %s22 = ssub.s32 %s17, 1
      %s23 = ssub.s32 %s17, 2
      %s24 = sadd.s32 %s17, 1
      %s25 = ssub.s32 %s17, %s24
      %p26 = scmp.eq.s32.totalorder %s25, 0
      %s28 = sadd.s32 %s27, 1
      %s29 = scalar_select %p26, %s27, %s28
      %p32 = pneg %p26
      %p33 = scmp.eq.s32.totalorder %s17, 1
      %p34 = por %p32, %p33
      %p35 = scmp.ne.s32.totalorder %s27, %s30
      %p36 = scmp.eq.s32.totalorder %s17, 0
      %p37 = por %p35, %p36
      %p38 = scmp.ne.s32.totalorder %s27, %s30
      %p39 = scmp.eq.s32.totalorder %s22, 1
      %p40 = por %p38, %p39
      %p41 = scmp.ne.s32.totalorder %s30, %s31
      %p42 = scmp.eq.s32.totalorder %s22, 0
      %p43 = por %p41, %p42
      %p44 = scmp.ne.s32.totalorder %s30, %s31
      %p45 = scmp.eq.s32.totalorder %s23, 1
      %p46 = por %p44, %p45
      %p48 = scmp.ne.s32.totalorder %s31, %s47
      %p49 = scmp.eq.s32.totalorder %s23, 0
      %p50 = por %p48, %p49
      %s52 = sadd.s32 %s51, 1
      %p55 = scmp.eq.s32.totalorder %s17, 1
      %p56 = scmp.ne.s32.totalorder %s51, %s53
      %p57 = scmp.eq.s32.totalorder %s17, 0
      %p58 = por %p56, %p57
      %p59 = scmp.ne.s32.totalorder %s51, %s53
      %p60 = scmp.eq.s32.totalorder %s22, 1
      %p61 = por %p59, %p60
      %p62 = scmp.ne.s32.totalorder %s53, %s54
      %p63 = scmp.eq.s32.totalorder %s22, 0
      %p64 = por %p62, %p63
      %p65 = scmp.ne.s32.totalorder %s53, %s54
      %p66 = scmp.eq.s32.totalorder %s23, 1
      %p67 = por %p65, %p66
      %p69 = scmp.ne.s32.totalorder %s54, %s68
      %p70 = scmp.eq.s32.totalorder %s23, 0
      %p71 = por %p69, %p70
      %s73 = sadd.s32 %s72, 1
      %p76 = scmp.eq.s32.totalorder %s17, 1
      %p77 = scmp.ne.s32.totalorder %s72, %s74
      %p78 = scmp.eq.s32.totalorder %s17, 0
      %p79 = por %p77, %p78
      %p80 = scmp.ne.s32.totalorder %s72, %s74
      %p81 = scmp.eq.s32.totalorder %s22, 1
      %p82 = por %p80, %p81
      %p83 = scmp.ne.s32.totalorder %s74, %s75
      %p84 = scmp.eq.s32.totalorder %s22, 0
      %p85 = por %p83, %p84
      %p86 = scmp.ne.s32.totalorder %s74, %s75
      %p87 = scmp.eq.s32.totalorder %s23, 1
      %p88 = por %p86, %p87
      %p90 = scmp.ne.s32.totalorder %s75, %s89
      %p91 = scmp.eq.s32.totalorder %s23, 0
      %p92 = por %p90, %p91
      %s94 = sadd.s32 %s93, 1
      %p97 = scmp.eq.s32.totalorder %s17, 1
      %p98 = scmp.ne.s32.totalorder %s93, %s95
      %p99 = scmp.eq.s32.totalorder %s17, 0
      %p100 = por %p98, %p99
      %p101 = scmp.ne.s32.totalorder %s93, %s95
      %p102 = scmp.eq.s32.totalorder %s22, 1
      %p103 = por %p101, %p102
      %p104 = scmp.ne.s32.totalorder %s95, %s96
      %p105 = scmp.eq.s32.totalorder %s22, 0
      %p106 = por %p104, %p105
      %p107 = scmp.ne.s32.totalorder %s95, %s96
      %p108 = scmp.eq.s32.totalorder %s23, 1
      %p109 = por %p107, %p108
      %p111 = scmp.ne.s32.totalorder %s96, %s110
      %p112 = scmp.eq.s32.totalorder %s23, 0
      %p113 = por %p111, %p112
      %s114 = ssub.s32 %s17, %s24
      %p115 = scmp.eq.s32.totalorder %s114, 0
      %s117 = sadd.s32 %s116, 1
      %s118 = scalar_select %p115, %s116, %s117
      %p121 = pneg %p115
      %p122 = scmp.eq.s32.totalorder %s17, 1
      %p123 = por %p121, %p122
      %p124 = scmp.ne.s32.totalorder %s116, %s119
      %p125 = scmp.eq.s32.totalorder %s17, 0
      %p126 = por %p124, %p125
      %p127 = scmp.ne.s32.totalorder %s116, %s119
      %p128 = scmp.eq.s32.totalorder %s22, 1
      %p129 = por %p127, %p128
      %p130 = scmp.ne.s32.totalorder %s119, %s120
      %p131 = scmp.eq.s32.totalorder %s22, 0
      %p132 = por %p130, %p131
      %p133 = scmp.ne.s32.totalorder %s119, %s120
      %p134 = scmp.eq.s32.totalorder %s23, 1
      %p135 = por %p133, %p134
      %p137 = scmp.ne.s32.totalorder %s120, %s136
      %p138 = scmp.eq.s32.totalorder %s23, 0
      %p139 = por %p137, %p138
      %p140 = scmp.le.s32.totalorder 1, %s17
      %p141 = scmp.lt.s32.totalorder %s17, 3
      %p142 = pnand %p140, %p141
      %p143 = pneg %p142
      // Predicated region
      $region9: #{compressed_linear_apply.1} parent=5 // pred_check
        _
      $region10: #{compressed_linear_apply.1} parent=5 // pred_check_branch
        %145 = sbr.rel (%p142) target = $region12
      $region11: #{compressed_linear_apply.1} parent=5 // pred_region
        %s146 = ssub.s32 %s17, 1
        // Predicated region
        $region13: #{compressed_linear_apply.1} parent=11 // pred_check
          %p147 = pneg %p64
        $region14: #{compressed_linear_apply.1} parent=11 // pred_check_branch
          %149 = sbr.rel (%p147) target = $region16
        $region15: #{compressed_linear_apply.1} parent=11 // pred_region
          %s151 = ssub.s32 256, 256
          %152 = vsyncadd [#allocation6], %s151
          %s153 = sshll.u32 [#allocation5], 4
          %s154 = int_to_ptr.vmem [resolvable:$true] %s153
          %159 = dma.hbm_to_vmem [thread:$0]  %s1, 256, %s154, [#allocation6], 64, 64, 4
        $region16: #{compressed_linear_apply.1} parent=11 // pred_fallthru
          _
        // Predicated region
        $region17: #{compressed_linear_apply.1} parent=11 // pred_check
          %p160 = pneg %p85
        $region18: #{compressed_linear_apply.1} parent=11 // pred_check_branch
          %162 = sbr.rel (%p160) target = $region20
        $region19: #{compressed_linear_apply.1} parent=11 // pred_region
          %s164 = ssub.s32 1024, 1024
          %165 = vsyncadd [#allocation6], %s164
          %s166 = sshll.u32 [#allocation7], 4
          %s167 = int_to_ptr.vmem [resolvable:$true] %s166
          %172 = dma.hbm_to_vmem [thread:$0]  %s2, 1024, %s167, [#allocation6], 64, 64, 4
        $region20: #{compressed_linear_apply.1} parent=11 // pred_fallthru
          _
        // Predicated region
        $region21: #{compressed_linear_apply.1} parent=11 // pred_check
          %p173 = pneg %p106
        $region22: #{compressed_linear_apply.1} parent=11 // pred_check_branch
          %175 = sbr.rel (%p173) target = $region24
        $region23: #{compressed_linear_apply.1} parent=11 // pred_region
          _
        $region24: #{compressed_linear_apply.1} parent=11 // pred_fallthru
          _
      $region12: #{compressed_linear_apply.1} parent=5 // pred_fallthru
        _
      %p176 = scmp.lt.s32.totalorder %s17, 2
      // Predicated region
      $region25: #{compressed_linear_apply.1} parent=5 // pred_check
        %p177 = pneg %p176
      $region26: #{compressed_linear_apply.1} parent=5 // pred_check_branch
        %179 = sbr.rel (%p177) target = $region28
      $region27: #{compressed_linear_apply.1} parent=5 // pred_region
        // Predicated region
        $region29: #{compressed_linear_apply.1} parent=27 // pred_check
          %p180 = pneg %p37
        $region30: #{compressed_linear_apply.1} parent=27 // pred_check_branch
          %182 = sbr.rel (%p180) target = $region32
        $region31: #{compressed_linear_apply.1} parent=27 // pred_region
          %s183 = sand.u32 %s27, 1
          %s184 = scalar_lea.sflag [#allocation3], %s183
          %s185 = sand.u32 %s27, 1
          %s186 = smul.addr %s185, 8
          %s187 = scalar_lea.vmem [#allocation2], %s186
          %s189 = ssub.s32 128, 128
          %190 = vsyncadd %s184, %s189
          %s191 = smul.addr %s17, 128
          %s192 = scalar_lea.hbm %s0, %s191
          %s194 = sshll.u32 %s187, 4
          %s195 = int_to_ptr.vmem [resolvable:$true] %s194
          %197 = dma.hbm_to_vmem [thread:$0]  %s192, 128, %s195, %s184
        $region32: #{compressed_linear_apply.1} parent=27 // pred_fallthru
          _
      $region28: #{compressed_linear_apply.1} parent=5 // pred_fallthru
        _
      %p198 = scmp.le.s32.totalorder 1, %s17
      %p199 = scmp.lt.s32.totalorder %s17, 3
      %p200 = pnand %p198, %p199
      %p201 = pneg %p200
      // Predicated region
      $region33: #{compressed_linear_apply.1} parent=5 // pred_check
        _
      $region34: #{compressed_linear_apply.1} parent=5 // pred_check_branch
        %203 = sbr.rel (%p200) target = $region36
      $region35: #{compressed_linear_apply.1} parent=5 // pred_region
        %s204 = ssub.s32 %s17, 1
        %s205 = sand.u32 %s30, 1
        %s206 = scalar_lea.sflag [#allocation3], %s205
        %s207 = sand.u32 %s30, 1
        %s208 = smul.addr %s207, 8
        %s209 = scalar_lea.vmem [#allocation2], %s208
        // Predicated region
        $region37: #{compressed_linear_apply.1} parent=35 // pred_check
          %p210 = pneg %p43
        $region38: #{compressed_linear_apply.1} parent=35 // pred_check_branch
          %212 = sbr.rel (%p210) target = $region40
        $region39: #{compressed_linear_apply.1} parent=35 // pred_region
          %213 = dma.done %s206, 128
        $region40: #{compressed_linear_apply.1} parent=35 // pred_fallthru
          _
        // Predicated region
        $region41: #{compressed_linear_apply.1} parent=35 // pred_check
          %p214 = pneg %p64
        $region42: #{compressed_linear_apply.1} parent=35 // pred_check_branch
          %216 = sbr.rel (%p214) target = $region44
        $region43: #{compressed_linear_apply.1} parent=35 // pred_region
          %217 = dma.done [#allocation6], 256
        $region44: #{compressed_linear_apply.1} parent=35 // pred_fallthru
          _
        // Predicated region
        $region45: #{compressed_linear_apply.1} parent=35 // pred_check
          %p218 = pneg %p85
        $region46: #{compressed_linear_apply.1} parent=35 // pred_check_branch
          %220 = sbr.rel (%p218) target = $region48
        $region47: #{compressed_linear_apply.1} parent=35 // pred_region
          %221 = dma.done [#allocation6], 1024
        $region48: #{compressed_linear_apply.1} parent=35 // pred_fallthru
          _
        %s222 = sand.u32 %s30, 1
        %s223 = scalar_lea.sflag [#allocation3], %s222
        %s224 = sand.u32 %s30, 1
        %s225 = smul.addr %s224, 8
        %s226 = scalar_lea.vmem [#allocation2], %s225
        %p227 = pneg %p43
        %p228 = pneg %p40
        %p229 = pneg %p64
        %p230 = pneg %p61
        %p231 = pneg %p85
        %p232 = pneg %p82
        %p233 = pneg %p106
        %p234 = pneg %p103
        %p235 = pneg %p132
        %p236 = pneg %p129
        %s237 = sand.u32 %s119, 1
        %s238 = scalar_lea.sflag [#allocation4], %s237
        %s239 = sand.u32 %s119, 1
        %s240 = smul.addr %s239, 8
        %s241 = scalar_lea.vmem [#allocation8], %s240
        %v243 = vld [vmem:[%s209] sm:$0xff]
        %v244 = vpack.c.bf16 %v243, %v243
        %v245 = vld [vmem:[#allocation5] sm:$0xf]
        %v246 = vld [vmem:[#allocation5 + $0x4] sm:$0xf]
        %v247 = vld [vmem:[#allocation5 + $0x8] sm:$0xf]
        %v248 = vld [vmem:[#allocation5 + $0xc] sm:$0xf]
        %v253 = vunpack.c.l.b16 %v245
        %v254 = vunpack.c.l.b16 %v246
        %v255 = vunpack.c.l.b16 %v247
        %v256 = vunpack.c.l.b16 %v248
        %v257 = vpack.c.b16 %v254, %v253
        %v258 = vpack.c.b16 %v256, %v255
        %vm261 = vcmask 261120
        %v263 = vsel %vm261, %v244, 0
        %265 = vmatprep.subr.bf16.mxu0 0
        %266 = vmatpush1.bf16.msra.mxu0 %v257
        %267 = vmatprep.subr.bf16.mxu0 0
        %268 = vmatpush1.bf16.msra.mxu0 %v258
        %269 = vmatprep.subr.bf16.mxu0 0
        %270 = vmatpush1.bf16.msra.mxu0 0
        %271 = vmatprep.subr.bf16.mxu0 0
        %272 = vmatpush1.bf16.msra.mxu0 0
        %273 = vmatprep.subr.bf16.mxu0 0
        %274 = vmatpush1.bf16.msra.mxu0 0
        %275 = vmatprep.subr.bf16.mxu0 0
        %276 = vmatpush1.bf16.msra.mxu0 0
        %277 = vmatprep.subr.bf16.mxu0 0
        %278 = vmatpush1.bf16.msra.mxu0 0
        %279 = vmatprep.subr.bf16.mxu0 0
        %280 = vmatpush1.bf16.msra.mxu0 0
        %281 = vmatprep.subr.bf16.mxu0 0
        %282 = vmatpush1.bf16.msra.mxu0 0
        %283 = vmatprep.subr.bf16.mxu0 0
        %284 = vmatpush1.bf16.msra.mxu0 0
        %285 = vmatprep.subr.bf16.mxu0 0
        %286 = vmatpush1.bf16.msra.mxu0 0
        %287 = vmatprep.subr.bf16.mxu0 0
        %288 = vmatpush1.bf16.msra.mxu0 0
        %289 = vmatprep.subr.bf16.mxu0 0
        %290 = vmatpush1.bf16.msra.mxu0 0
        %291 = vmatprep.subr.bf16.mxu0 0
        %292 = vmatpush1.bf16.msra.mxu0 0
        %293 = vmatprep.subr.bf16.mxu0 0
        %294 = vmatpush1.bf16.msra.mxu0 0
        %295 = vmatprep.subr.bf16.mxu0 0
        %296 = vmatpush1.bf16.msra.mxu0 0
        %297 = vmatprep.mubr.bf16.mxu0 0
        %298 = vmatmul.mubr.bf16.gmra.mrb[0].mxu0 %v263
        %v299 = vpop.f32.mrb[0].mxu0
        %v300 = vadd.f32 0.0, %v299
        %v301 = vpop.f32.mrb[0].mxu0
        %v302 = vpop.f32.mrb[0].mxu0
        %v303 = vpop.f32.mrb[0].mxu0
        %304 = vdwg.mxu0
        %v305 = vpack.c.bf16 %v300, %v300
        %v306 = vld [vmem:[#allocation7] sm:$0xf]
        %v307 = vld [vmem:[#allocation7 + $0x4] sm:$0xf]
        %v308 = vld [vmem:[#allocation7 + $0x8] sm:$0xf]
        %v309 = vld [vmem:[#allocation7 + $0xc] sm:$0xf]
        %v310 = vld [vmem:[#allocation7 + $0x10] sm:$0xf]
        %v311 = vld [vmem:[#allocation7 + $0x14] sm:$0xf]
        %v312 = vld [vmem:[#allocation7 + $0x18] sm:$0xf]
        %v313 = vld [vmem:[#allocation7 + $0x1c] sm:$0xf]
        %v314 = vld [vmem:[#allocation7 + $0x20] sm:$0xf]
        %v315 = vld [vmem:[#allocation7 + $0x24] sm:$0xf]
        %v316 = vld [vmem:[#allocation7 + $0x28] sm:$0xf]
        %v317 = vld [vmem:[#allocation7 + $0x2c] sm:$0xf]
        %v318 = vld [vmem:[#allocation7 + $0x30] sm:$0xf]
        %v319 = vld [vmem:[#allocation7 + $0x34] sm:$0xf]
        %v320 = vld [vmem:[#allocation7 + $0x38] sm:$0xf]
        %v321 = vld [vmem:[#allocation7 + $0x3c] sm:$0xf]
        %v322 = vld [vmem:[%s3] sm:$0x1]
        %v324 = vlaneseq
        %v325 = vshrl.u32 %v324, 7
        %v326 = vsub.s32 0, %v325
        %v327 = vrot.slane %v322, %v326
        %v345 = vunpack.c.l.b16 %v306
        %v346 = vunpack.c.l.b16 %v307
        %v347 = vunpack.c.l.b16 %v308
        %v348 = vunpack.c.l.b16 %v309
        %v349 = vunpack.c.l.b16 %v310
        %v350 = vunpack.c.l.b16 %v311
        %v351 = vunpack.c.l.b16 %v312
        %v352 = vunpack.c.l.b16 %v313
        %v353 = vunpack.c.l.b16 %v314
        %v354 = vunpack.c.l.b16 %v315
        %v355 = vunpack.c.l.b16 %v316
        %v356 = vunpack.c.l.b16 %v317
        %v357 = vunpack.c.l.b16 %v318
        %v358 = vunpack.c.l.b16 %v319
        %v359 = vunpack.c.l.b16 %v320
        %v360 = vunpack.c.l.b16 %v321
        %v361 = vpack.c.b16 %v346, %v345
        %v362 = vpack.c.b16 %v348, %v347
        %v363 = vpack.c.b16 %v350, %v349
        %v364 = vpack.c.b16 %v352, %v351
        %v365 = vpack.c.b16 %v354, %v353
        %v366 = vpack.c.b16 %v356, %v355
        %v367 = vpack.c.b16 %v358, %v357
        %v368 = vpack.c.b16 %v360, %v359
        %377 = vmatprep.subr.bf16.mxu0 0
        %378 = vmatpush1.bf16.msra.mxu0 %v361
        %379 = vmatprep.subr.bf16.mxu0 0
        %380 = vmatpush1.bf16.msra.mxu0 %v362
        %381 = vmatprep.subr.bf16.mxu0 0
        %382 = vmatpush1.bf16.msra.mxu0 %v363
        %383 = vmatprep.subr.bf16.mxu0 0
        %384 = vmatpush1.bf16.msra.mxu0 %v364
        %385 = vmatprep.subr.bf16.mxu0 0
        %386 = vmatpush1.bf16.msra.mxu0 %v365
        %387 = vmatprep.subr.bf16.mxu0 0
        %388 = vmatpush1.bf16.msra.mxu0 %v366
        %389 = vmatprep.subr.bf16.mxu0 0
        %390 = vmatpush1.bf16.msra.mxu0 %v367
        %391 = vmatprep.subr.bf16.mxu0 0
        %392 = vmatpush1.bf16.msra.mxu0 %v368
        %393 = vmatprep.subr.bf16.mxu0 0
        %394 = vmatpush1.bf16.msra.mxu0 0
        %395 = vmatprep.subr.bf16.mxu0 0
        %396 = vmatpush1.bf16.msra.mxu0 0
        %397 = vmatprep.subr.bf16.mxu0 0
        %398 = vmatpush1.bf16.msra.mxu0 0
        %399 = vmatprep.subr.bf16.mxu0 0
        %400 = vmatpush1.bf16.msra.mxu0 0
        %401 = vmatprep.subr.bf16.mxu0 0
        %402 = vmatpush1.bf16.msra.mxu0 0
        %403 = vmatprep.subr.bf16.mxu0 0
        %404 = vmatpush1.bf16.msra.mxu0 0
        %405 = vmatprep.subr.bf16.mxu0 0
        %406 = vmatpush1.bf16.msra.mxu0 0
        %407 = vmatprep.subr.bf16.mxu0 0
        %408 = vmatpush1.bf16.msra.mxu0 0
        %409 = vmatprep.mubr.bf16.mxu0 0
        %410 = vmatmul.mubr.bf16.gmra.mrb[0].mxu0 %v305
        %v411 = vpop.f32.mrb[0].mxu0
        %v412 = vadd.f32 %v327, %v411
        %v413 = vpop.f32.mrb[0].mxu0
        %v414 = vpop.f32.mrb[0].mxu0
        %v415 = vpop.f32.mrb[0].mxu0
        %416 = vdwg.mxu0
        %417 = vst [vmem:[%s241] sm:$0xff] %v412
        %s418 = sand.u32 %s119, 1
        %s419 = scalar_lea.sflag [#allocation4], %s418
        %s420 = sand.u32 %s119, 1
        %s421 = smul.addr %s420, 8
        %s422 = scalar_lea.vmem [#allocation8], %s421
        // Predicated region
        $region49: #{compressed_linear_apply.1} parent=35 // pred_check
          %p423 = pneg %p129
        $region50: #{compressed_linear_apply.1} parent=35 // pred_check_branch
          %425 = sbr.rel (%p423) target = $region52
        $region51: #{compressed_linear_apply.1} parent=35 // pred_region
          %s427 = ssub.s32 128, 128
          %428 = vsyncadd %s419, %s427
          %s429 = smul.addr %s22, 128
          %s430 = scalar_lea.hbm %s4, %s429
          %s432 = sshll.u32 %s422, 4
          %s433 = int_to_ptr.vmem [resolvable:$true] %s432
          %435 = dma.vmem_to_hbm [thread:$0]  %s433, 128, %s430, %s419
        $region52: #{compressed_linear_apply.1} parent=35 // pred_fallthru
          _
      $region36: #{compressed_linear_apply.1} parent=5 // pred_fallthru
        _
      %p436 = scmp.le.s32.totalorder 2, %s17
      // Predicated region
      $region53: #{compressed_linear_apply.1} parent=5 // pred_check
        %p437 = pneg %p436
      $region54: #{compressed_linear_apply.1} parent=5 // pred_check_branch
        %439 = sbr.rel (%p437) target = $region56
      $region55: #{compressed_linear_apply.1} parent=5 // pred_region
        %s440 = ssub.s32 %s17, 2
        // Predicated region
        $region57: #{compressed_linear_apply.1} parent=55 // pred_check
          %p441 = pneg %p135
        $region58: #{compressed_linear_apply.1} parent=55 // pred_check_branch
          %443 = sbr.rel (%p441) target = $region60
        $region59: #{compressed_linear_apply.1} parent=55 // pred_region
          %s444 = sand.u32 %s120, 1
          %s445 = scalar_lea.sflag [#allocation4], %s444
          %s446 = sand.u32 %s120, 1
          %s447 = smul.addr %s446, 8
          %s448 = scalar_lea.vmem [#allocation8], %s447
          %449 = dma.done %s445, 128
        $region60: #{compressed_linear_apply.1} parent=55 // pred_fallthru
          _
      $region56: #{compressed_linear_apply.1} parent=5 // pred_fallthru
        _
    $region6: #{compressed_linear_apply.1} parent=1 // loop_footer
      %s21 = sadd.s32 1, %s17
    $region7: #{compressed_linear_apply.1} parent=1 // loop_footer_branch
      %16 = sbr.rel target = $region3
    $region8: #{compressed_linear_apply.1} parent=1 // loop_exit
      _
    %450 = vsyncpa [#allocation3], 1
    %s451 = scalar_lea.sflag [#allocation3], 1
    %452 = vsyncpa %s451, 1
    %453 = vsyncpa [#allocation6], 1
    %454 = vsyncpa [#allocation4], 1
    %s455 = scalar_lea.sflag [#allocation4], 1
    %456 = vsyncpa %s455, 1

</llo_original>
